<compile_context>
chip_gen: v7x
topology: tpu7x:2x2x1
jax: 0.10.0
libtpu: 0.0.40
codegen_flags: <defaults>
</compile_context>

<pallas_src>
import functools

import jax
import jax.numpy as jnp
from jax.experimental import pallas as pl
from jax.experimental.pallas import tpu as pltpu


# ----------------------------- kernel ---------------------------------------


def _mish_kernel(x_ref, o_ref, *, approx_recip):
    x = x_ref[...].astype(jnp.float32)
    # mish(x) = x * e*(e+2) / (e*(e+2) + 2), e = exp(min(x, 20)).
    # One EUP exp + one reciprocal/divide; clamping at 20 keeps e^2 finite and
    # the ratio is exactly 1.0 (f32) for x >= 20, so the clamp is lossless.
    e = jnp.exp(jnp.minimum(x, 20.0))
    num = e * (e + 2.0)
    den = num + 2.0
    if approx_recip:
        ratio = num * pl.reciprocal(den, approx=True)
    else:
        ratio = num / den
    o_ref[...] = (x * ratio).astype(o_ref.dtype)


# ----------------------------- wrapper ---------------------------------------

_LANE_TILE = 512                    # default lane-dense last dim (4 * 128)
_TARGET_BLOCK_BYTES = 2 * 1024 * 1024   # ~2 MiB / buffer; 2 arrays x 2 bufs = 8 MiB
_MIN_GRID = 4                       # aim for >= 4 blocks (v7x megacore, pipelining)


def _round_up(n, m):
    return ((n + m - 1) // m) * m


def mish_forward(x):
    """Elementwise Mish for an array of any shape (matches torch Mish.forward)."""
    orig_shape = x.shape
    dtype = x.dtype
    n = x.size
    if n == 0:
        return x

    itemsize = jnp.dtype(dtype).itemsize
    sublane = max(8, 32 // itemsize)        # 8 (f32) / 16 (bf16) / 32 (int8)

    # Pick a lane width that avoids pad/slice HBM re-streams whenever possible.
    if n % _LANE_TILE == 0:
        lane, pad = _LANE_TILE, 0
    elif (
        orig_shape
        and orig_shape[-1] % 128 == 0
        and orig_shape[-1] * sublane * itemsize <= _TARGET_BLOCK_BYTES
    ):
        lane, pad = orig_shape[-1], 0        # last dim is already lane-dense
    else:
        lane, pad = _LANE_TILE, (-n) % _LANE_TILE  # pad only the sub-512 tail

    flat = x.reshape(-1)
    if pad:
        flat = jnp.pad(flat, (0, pad))
    rows = flat.size // lane
    slab = flat.reshape(rows, lane)

    # Row tile: biggest block (~2 MiB) that fits the budget, but capped so the
    # grid has >= _MIN_GRID blocks for medium inputs (v7x second TensorCore).
    max_row_tile = max(sublane,
                       (_TARGET_BLOCK_BYTES // (lane * itemsize)) // sublane * sublane)
    if rows <= sublane:
        row_tile = rows                      # single full-extent block
    else:
        target = _round_up(pl.cdiv(rows, _MIN_GRID), sublane)
        row_tile = min(max_row_tile, target)
    grid = (pl.cdiv(rows, row_tile),)        # partial edge block is masked by Pallas

    kernel = functools.partial(_mish_kernel, approx_recip=(itemsize <= 2))

    cost = pl.CostEstimate(
        flops=6 * n,
        transcendentals=2 * n,
        bytes_accessed=2 * n * itemsize,
    )

    out = pl.pallas_call(
        kernel,
        out_shape=jax.ShapeDtypeStruct((rows, lane), dtype),
        grid=grid,
        in_specs=[pl.BlockSpec((row_tile, lane), lambda i: (i, 0))],
        out_specs=pl.BlockSpec((row_tile, lane), lambda i: (i, 0)),
        compiler_params=pltpu.CompilerParams(
            dimension_semantics=("parallel",),
        ),
        cost_estimate=cost,
    )(slab)

    out_flat = out.reshape(-1)
    if pad:
        out_flat = out_flat[:n]
    return out_flat.reshape(orig_shape)


# ----------------------------- demo / check ----------------------------------


def _reference(x):
    return x * jnp.tanh(jax.nn.softplus(x))


if __name__ == "__main__":
    key = jax.random.PRNGKey(0)

    # Main case consistent with the module spec (N, *): (2, 4, 16, 16).
    shapes = [
        (2, 4, 16, 16),   # fast path: n % 512 == 0, rows <= sublane
        (6000,),          # pad path + partial edge row block, grid > 1
        (5, 7, 3),        # tiny odd shape, tail padding only
    ]

    for i, shape in enumerate(shapes):
        k = jax.random.fold_in(key, i)
        x = jax.random.normal(k, shape, jnp.float32) * 3.0
        out = jax.block_until_ready(mish_forward(x))
        ref = _reference(x)
        assert out.shape == x.shape
        assert out.dtype == x.dtype
        assert jnp.allclose(out, ref, atol=1e-6, rtol=1e-5), (
            shape,
            float(jnp.max(jnp.abs(out - ref))),
        )

    print("KERNEL_OK")
</pallas_src>

<mosaic_0001>
module attributes {stable_mosaic.version = 11 : i64} {
  func.func @_mish_kernel(%arg0: i32, %arg1: memref<4x512xf32, #tpu.memory_space<vmem>>, %arg2: memref<4x512xf32, #tpu.memory_space<vmem>>) attributes {dimension_semantics = [#tpu.dimension_semantics<parallel>], iteration_bounds = array<i64: 1>, scalar_prefetch = 0 : i64, scratch_operands = 0 : i64, tpu.core_type = #tpu.core_type<tc>, window_params = [{transform_indices = @transform_0, window_bounds = array<i64: 4, 512>}, {transform_indices = @transform_1, window_bounds = array<i64: 4, 512>}]} {
    %c0 = arith.constant 0 : index
    %c0_0 = arith.constant 0 : index
    %0 = vector.load %arg1[%c0, %c0_0] : memref<4x512xf32, #tpu.memory_space<vmem>>, vector<4x512xf32>
    %cst = arith.constant 2.000000e+01 : f32
    %1 = vector.broadcast %cst : f32 to vector<4x512xf32>
    %2 = arith.minimumf %0, %1 : vector<4x512xf32>
    %3 = math.exp %2 : vector<4x512xf32>
    %cst_1 = arith.constant 2.000000e+00 : f32
    %4 = vector.broadcast %cst_1 : f32 to vector<4x512xf32>
    %5 = arith.addf %3, %4 : vector<4x512xf32>
    %6 = arith.mulf %3, %5 : vector<4x512xf32>
    %cst_2 = arith.constant 2.000000e+00 : f32
    %7 = vector.broadcast %cst_2 : f32 to vector<4x512xf32>
    %8 = arith.addf %6, %7 : vector<4x512xf32>
    %9 = arith.divf %6, %8 : vector<4x512xf32>
    %10 = arith.mulf %0, %9 : vector<4x512xf32>
    %c0_3 = arith.constant 0 : index
    %c0_4 = arith.constant 0 : index
    %11 = vector.load %arg2[%c0_3, %c0_4] : memref<4x512xf32, #tpu.memory_space<vmem>>, vector<4x512xf32>
    tpu.vector_store %arg2[%c0_3, %c0_4], %10 {strides = array<i32>} : memref<4x512xf32, #tpu.memory_space<vmem>>, vector<4x512xf32>,
    return
  }
  func.func @transform_0(%arg0: i32) -> (i32, i32) {
    %c0_i32 = arith.constant 0 : i32
    %c0_i32_0 = arith.constant 0 : i32
    return %arg0, %c0_i32 : i32, i32
  }
  func.func @transform_1(%arg0: i32) -> (i32, i32) {
    %c0_i32 = arith.constant 0 : i32
    %c0_i32_0 = arith.constant 0 : i32
    return %arg0, %c0_i32 : i32, i32
  }
}

</mosaic_0001>

<llo_original>
// kernel: tpu_custom_call.1
$region0: #{tpu_custom_call.1}
  #allocation0 [shape = 'u32[]', space=smem, size = 0x4, offset = 0x4, fixed_abs, tag = 'smem constant byte address 0x4 - core index']
  #allocation1 [shape = 'u32[144,128]{1,0:T(1,128)}', space=vmem, size = 0x12000, scoped, tag = 'internal scratch']
  %s0 = inlined_call_operand.hbm [shape: f32[4,512], index: 0, kind: input, shape index: {}]
  %s1 = inlined_call_operand.hbm [shape: f32[4,512], index: 1, kind: output, shape index: {}]
  %s2 = sld [smem:[#allocation0]]
  $region18: #{tpu_custom_call.1} parent=0
    _
  %s4 = ssub.s32 1, %s2
  %s5 = scalar_select 0, %s4, %s2
  $region1: #{tpu_custom_call.1} parent=0
    #allocation2 [shape = 'u8[8192]{0}', space=vmem, size = 0x2000, scoped, tag = 'input window, operand 0, single buffered']
    #allocation3 [shape = 's32[1]{0}', space=sflag, size = 0x4, scoped, tag = 'scoped memory for tpu_custom_call.1']
    #allocation4 [shape = 's32[1]{0}', space=sflag, size = 0x4, scoped, tag = 'scoped memory for tpu_custom_call.1']
    #allocation5 [shape = 'u8[8192]{0}', space=vmem, size = 0x2000, scoped, tag = 'output window, operand 0, single buffered']
    %6 = vsyncpa [#allocation3], 0
    %7 = vsyncpa [#allocation4], 0
    // Predicated region
    $region2: #{tpu_custom_call.1} parent=1 // pred_check
      _
    $region3: #{tpu_custom_call.1} parent=1 // pred_check_branch
      %9 = sbr.rel (0) target = $region5
    $region4: #{tpu_custom_call.1} parent=1 // pred_region
      %s11 = ssub.s32 256, 256
      %12 = vsyncadd [#allocation3], %s11
      %s14 = sshll.u32 [#allocation2], 4
      %s15 = int_to_ptr.vmem [resolvable:$true] %s14
      %17 = dma.hbm_to_vmem [thread:$0]  %s0, 256, %s15, [#allocation3]
    $region5: #{tpu_custom_call.1} parent=1 // pred_fallthru
      _
    // Predicated region
    $region6: #{tpu_custom_call.1} parent=1 // pred_check
      _
    $region7: #{tpu_custom_call.1} parent=1 // pred_check_branch
      %19 = sbr.rel (0) target = $region9
    $region8: #{tpu_custom_call.1} parent=1 // pred_region
      %20 = dma.done [#allocation3], 256
    $region9: #{tpu_custom_call.1} parent=1 // pred_fallthru
      _
    %v21 = vld [vmem:[#allocation2] sm:$0xff]
    %v22 = vld [vmem:[#allocation2 + $0x8] sm:$0xff]
    %v23 = vmin.f32 %v21, 20.0
    %v24 = vmin.f32 %v22, 20.0
    %v25 = vmul.f32 %v23, 1.442695
    %v26 = vpow.pop %v25
    %v27 = vmul.f32 %v24, 1.442695
    %v28 = vpow.pop %v27
    %v29 = vadd.f32 %v26, 2.0
    %v30 = vadd.f32 %v28, 2.0
    %v31 = vmul.f32 %v26, %v29
    %v32 = vmul.f32 %v28, %v30
    %v33 = vadd.f32 %v31, 2.0
    %v34 = vadd.f32 %v32, 2.0
    %v35 = vrcp.pop %v33
    %v36 = vmul.f32 %v31, %v35
    %v37 = vrcp.pop %v34
    %v38 = vmul.f32 %v32, %v37
    %v39 = vmul.f32 %v21, %v36
    %v40 = vmul.f32 %v22, %v38
    %41 = vst [vmem:[#allocation5] sm:$0xff] %v39
    %42 = vst [vmem:[#allocation5 + $0x8] sm:$0xff] %v40
    // Predicated region
    $region10: #{tpu_custom_call.1} parent=1 // pred_check
      _
    $region11: #{tpu_custom_call.1} parent=1 // pred_check_branch
      %44 = sbr.rel (0) target = $region13
    $region12: #{tpu_custom_call.1} parent=1 // pred_region
      %s46 = ssub.s32 256, 256
      %47 = vsyncadd [#allocation4], %s46
      %s49 = sshll.u32 [#allocation5], 4
      %s50 = int_to_ptr.vmem [resolvable:$true] %s49
      %52 = dma.vmem_to_hbm [thread:$0]  %s50, 256, %s1, [#allocation4]
    $region13: #{tpu_custom_call.1} parent=1 // pred_fallthru
      _
    // Predicated region
    $region14: #{tpu_custom_call.1} parent=1 // pred_check
      _
    $region15: #{tpu_custom_call.1} parent=1 // pred_check_branch
      %54 = sbr.rel (0) target = $region17
    $region16: #{tpu_custom_call.1} parent=1 // pred_region
      %55 = dma.done [#allocation4], 256
    $region17: #{tpu_custom_call.1} parent=1 // pred_fallthru
      _
    %56 = vsyncpa [#allocation3], 1
    %57 = vsyncpa [#allocation4], 1

</llo_original>
